<compile_context>
chip_gen: v6e
topology: v6e:2x2x1
jax: 0.10.0
libtpu: 0.0.40
codegen_flags: <defaults>
</compile_context>

<pallas_src>
import functools

import jax
import jax.numpy as jnp
from jax import lax
from jax.experimental import pallas as pl
from jax.experimental.pallas import tpu as pltpu


def _round_up(x, m):
    return (x + m - 1) // m * m


def _vmem_capacity_bytes():
    """Best-effort physical VMEM query; conservative (v7x-sized) fallback."""
    try:
        info = pltpu.get_tpu_info()
        for attr in ("vmem_capacity_bytes", "vmem_size_bytes", "vmem_bytes"):
            v = getattr(info, attr, None)
            if v:
                return int(v)
    except Exception:
        pass
    return 64 * 1024 * 1024


def _ce_kernel(logits_ref, labels_ref, loss_ref, m_sc, l_sc, sel_sc, *,
               total_n, total_c, tile_n, tile_c, mask_cols):
    i = pl.program_id(0)          # row-tile index   ("parallel")
    j = pl.program_id(1)          # class-tile index ("arbitrary", reduction axis)

    @pl.when(j == 0)
    def _init():
        m_sc[...] = jnp.full_like(m_sc, jnp.finfo(jnp.float32).min)
        l_sc[...] = jnp.zeros_like(l_sc)
        sel_sc[...] = jnp.zeros_like(sel_sc)

    block = logits_ref[...].astype(jnp.float32)                   # (TN, TC) widened in VMEM
    col = lax.broadcasted_iota(jnp.int32, (tile_n, tile_c), 1)    # tile-local column ids

    if mask_cols:
        # Last class tile may read past C (no wrapper padding); mask the tail with a very
        # negative value so exp() underflows to exactly 0 in the LSE.
        limit = total_c - j * tile_c        # scalar; >= tile_c on all but the last tile
        block = jnp.where(col < limit, block, jnp.finfo(jnp.float32).min)

    # --- online (streaming) logsumexp across class tiles ---
    m_prev = m_sc[...]
    m_new = jnp.maximum(m_prev, jnp.max(block, axis=-1, keepdims=True))
    alpha = jnp.exp(m_prev - m_new)
    p = jnp.exp(block - m_new)
    l_sc[...] = alpha * l_sc[...] + jnp.sum(p, axis=-1, keepdims=True)
    m_sc[...] = m_new

    # --- logit at the label index (one-hot select; compare against tile-local label) ---
    labels_local = labels_ref[...] - j * tile_c                   # (TN, 1) int32, cheap
    sel_sc[...] += jnp.sum(jnp.where(col == labels_local, block, 0.0),
                           axis=-1, keepdims=True)

    @pl.when(j == pl.num_programs(1) - 1)
    def _finalize():
        lse = m_sc[...] + jnp.log(l_sc[...])                      # (TN, 1)
        row = i * tile_n + lax.broadcasted_iota(jnp.int32, (tile_n, 1), 0)
        # rows past N (garbage reads, possibly NaN) are masked to 0 before the sum
        loss_col = jnp.where(row < total_n, lse - sel_sc[...], 0.0)
        partial = jnp.sum(loss_col, axis=0, keepdims=True)        # (1, 1) per-tile sum
        loss_ref[...] = jnp.broadcast_to(partial, (8, 128))       # lane-dense single store


def cross_entropy_loss(rpr, pred_cls, true_cls, *, tile_n=None, tile_c=None):
    """Matches CrossEntropyLoss.forward(rpr, pred_cls, true_cls); rpr is unused.

    pred_cls: (N, C) logits, any float dtype (kept in its native dtype in HBM).
    true_cls: (N,) integer class indices in [0, C).
    """
    # TODO(synk): nn.CrossEntropyLoss's ignore_index=-100, weight= and label_smoothing=
    # options are not handled; this implements the module's default happy path.
    del rpr  # the PyTorch module ignores it
    n, c = pred_cls.shape
    dtype_bytes = jnp.dtype(pred_cls.dtype).itemsize

    # ---- per-chip VMEM policy ----
    vmem_cap = _vmem_capacity_bytes()
    big_vmem = vmem_cap >= 100 * 1024 * 1024        # v5e/v6e: 128 MiB; v7x: 64 MiB per TC
    vmem_limit = (64 if big_vmem else 32) * 1024 * 1024
    tile_c_cap = 4096 if big_vmem else 2048

    # ---- class tiling: lane-aligned (multiple of 128), capped per chip ----
    if tile_c is None:
        tile_c = min(_round_up(c, 128), tile_c_cap)

    # ---- row tiling: budget = double-buffered native-dtype input block + ~3 full-block
    #      f32 temporaries (widened block / exp / mask), kept under ~7/8 of the limit ----
    if tile_n is None:
        per_elem_bytes = 2 * dtype_bytes + 12
        elem_budget = (vmem_limit * 7 // 8) // per_elem_bytes
        tile_n = max(128, min(1024, (elem_budget // tile_c) // 128 * 128))
        tile_n = min(tile_n, _round_up(n, 128))
        # v7x has 2 TensorCores; make sure the "parallel" row axis has extent >= 2.
        if (not big_vmem) and tile_n > 128 and pl.cdiv(n, tile_n) < 2:
            tile_n = max(128, min(tile_n, _round_up(pl.cdiv(n, 2), 128)))

    grid_rows = pl.cdiv(n, tile_n)
    grid_cols = pl.cdiv(c, tile_c)

    labels = true_cls.astype(jnp.int32).reshape(n, 1)

    kernel = functools.partial(
        _ce_kernel, total_n=n, total_c=c, tile_n=tile_n, tile_c=tile_c,
        mask_cols=(c % tile_c != 0))

    per_tile = pl.pallas_call(
        kernel,
        out_shape=jax.ShapeDtypeStruct((grid_rows * 8, 128), jnp.float32),
        grid_spec=pltpu.PrefetchScalarGridSpec(
            num_scalar_prefetch=0,
            grid=(grid_rows, grid_cols),
            in_specs=[
                pl.BlockSpec((tile_n, tile_c), lambda i, j: (i, j)),
                pl.BlockSpec((tile_n, 1), lambda i, j: (i, 0)),
            ],
            out_specs=pl.BlockSpec((8, 128), lambda i, j: (i, 0)),
            scratch_shapes=[
                pltpu.VMEM((tile_n, 1), jnp.float32),   # running max m
                pltpu.VMEM((tile_n, 1), jnp.float32),   # running sum l
                pltpu.VMEM((tile_n, 1), jnp.float32),   # selected (label) logit
            ],
        ),
        compiler_params=pltpu.CompilerParams(
            dimension_semantics=("parallel", "arbitrary"),
            vmem_limit_bytes=vmem_limit,
        ),
    )(pred_cls, labels)

    # each row tile wrote its (row-masked) partial loss sum, replicated over an (8,128)
    # block; reduce the tiny per-tile vector and divide by the *true* N in f32.
    partials = per_tile[::8, 0]                        # (grid_rows,)
    return jnp.sum(partials) / jnp.float32(n)


def _reference(pred_cls, true_cls):
    logits = pred_cls.astype(jnp.float32)
    logp = jax.nn.log_softmax(logits, axis=-1)
    nll = -jnp.take_along_axis(logp, true_cls.astype(jnp.int32)[:, None], axis=-1)
    return jnp.mean(nll)


if __name__ == "__main__":
    key = jax.random.PRNGKey(0)
    k1, k2, k3, k4, k5 = jax.random.split(key, 5)

    # small shapes consistent with the module: (N, C) logits + (N,) class indices
    N, C = 16, 32
    rpr = jax.random.normal(k1, (N, 64), dtype=jnp.float32)            # unused by forward
    pred_cls = jax.random.normal(k2, (N, C), dtype=jnp.float32)        # logits
    true_cls = jax.random.randint(k3, (N,), 0, C, dtype=jnp.int32)     # class indices

    loss = jax.block_until_ready(cross_entropy_loss(rpr, pred_cls, true_cls))
    ref = _reference(pred_cls, true_cls)
    assert jnp.allclose(loss, ref, atol=1e-5, rtol=1e-5), (loss, ref)

    # exercise the general path: bf16 logits (no wrapper up-cast), N not a multiple of
    # the row tile, C not a multiple of 128 -> in-kernel class-tail + row-tail masking.
    N2, C2 = 50, 130
    pred2 = jax.random.normal(k4, (N2, C2), dtype=jnp.bfloat16)
    true2 = jax.random.randint(k5, (N2,), 0, C2, dtype=jnp.int32)
    loss2 = jax.block_until_ready(cross_entropy_loss(None, pred2, true2))
    ref2 = _reference(pred2, true2)
    assert jnp.allclose(loss2, ref2, atol=1e-4, rtol=1e-4), (loss2, ref2)

    print("KERNEL_OK")
</pallas_src>

<mosaic_0001>
module attributes {stable_mosaic.version = 11 : i64} {
  func.func @_ce_kernel(%arg0: i32, %arg1: i32, %arg2: memref<128x128xf32, #tpu.memory_space<vmem>>, %arg3: memref<128x1xi32, #tpu.memory_space<vmem>>, %arg4: memref<8x128xf32, #tpu.memory_space<vmem>>, %arg5: memref<128x1xf32, #tpu.memory_space<vmem>>, %arg6: memref<128x1xf32, #tpu.memory_space<vmem>>, %arg7: memref<128x1xf32, #tpu.memory_space<vmem>>) attributes {dimension_semantics = [#tpu.dimension_semantics<parallel>, #tpu.dimension_semantics<arbitrary>], iteration_bounds = array<i64: 1, 1>, scalar_prefetch = 0 : i64, scratch_operands = 3 : i64, tpu.core_type = #tpu.core_type<tc>, window_params = [{transform_indices = @transform_0, window_bounds = array<i64: 128, 128>}, {transform_indices = @transform_1, window_bounds = array<i64: 128, 1>}, {transform_indices = @transform_2, window_bounds = array<i64: 8, 128>}]} {
    %c0_i32 = arith.constant 0 : i32
    %0 = arith.cmpi eq, %arg1, %c0_i32 : i32
    %1 = arith.extui %0 : i1 to i32
    %c0_i32_0 = arith.constant 0 : i32
    %2 = arith.cmpi ne, %1, %c0_i32_0 : i32
    scf.if %2 {
      %cst_23 = arith.constant -3.40282347E+38 : f32
      %43 = vector.broadcast %cst_23 : f32 to vector<128x1xf32>
      %c0_24 = arith.constant 0 : index
      %c0_25 = arith.constant 0 : index
      %44 = vector.load %arg5[%c0_24, %c0_25] : memref<128x1xf32, #tpu.memory_space<vmem>>, vector<128x1xf32>
      tpu.vector_store %arg5[%c0_24, %c0_25], %43 {strides = array<i32>} : memref<128x1xf32, #tpu.memory_space<vmem>>, vector<128x1xf32>,
      %cst_26 = arith.constant 0.000000e+00 : f32
      %45 = vector.broadcast %cst_26 : f32 to vector<128x1xf32>
      %c0_27 = arith.constant 0 : index
      %c0_28 = arith.constant 0 : index
      %46 = vector.load %arg6[%c0_27, %c0_28] : memref<128x1xf32, #tpu.memory_space<vmem>>, vector<128x1xf32>
      tpu.vector_store %arg6[%c0_27, %c0_28], %45 {strides = array<i32>} : memref<128x1xf32, #tpu.memory_space<vmem>>, vector<128x1xf32>,
      %cst_29 = arith.constant 0.000000e+00 : f32
      %47 = vector.broadcast %cst_29 : f32 to vector<128x1xf32>
      %c0_30 = arith.constant 0 : index
      %c0_31 = arith.constant 0 : index
      %48 = vector.load %arg7[%c0_30, %c0_31] : memref<128x1xf32, #tpu.memory_space<vmem>>, vector<128x1xf32>
      tpu.vector_store %arg7[%c0_30, %c0_31], %47 {strides = array<i32>} : memref<128x1xf32, #tpu.memory_space<vmem>>, vector<128x1xf32>,
    } else {
    }
    %c0 = arith.constant 0 : index
    %c0_1 = arith.constant 0 : index
    %3 = vector.load %arg2[%c0, %c0_1] : memref<128x128xf32, #tpu.memory_space<vmem>>, vector<128x128xf32>
    %4 = tpu.iota {dimensions = array<i32: 1>} : vector<128x128xi32>
    %c128_i32 = arith.constant 128 : i32
    %5 = arith.muli %arg1, %c128_i32 : i32
    %c32_i32 = arith.constant 32 : i32
    %6 = arith.subi %c32_i32, %5 : i32
    %7 = vector.broadcast %6 : i32 to vector<128x128xi32>
    %8 = arith.cmpi slt, %4, %7 : vector<128x128xi32>
    %cst = arith.constant -3.40282347E+38 : f32
    %9 = vector.broadcast %cst : f32 to vector<128x128xf32>
    %10 = arith.select %8, %3, %9 : vector<128x128xi1>, vector<128x128xf32>
    %c0_2 = arith.constant 0 : index
    %c0_3 = arith.constant 0 : index
    %11 = vector.load %arg5[%c0_2, %c0_3] : memref<128x1xf32, #tpu.memory_space<vmem>>, vector<128x1xf32>
    %cst_4 = arith.constant dense<0xFF800000> : vector<128xf32>
    %12 = vector.multi_reduction <maximumf>, %10, %cst_4 [1] : vector<128x128xf32> to vector<128xf32>
    %13 = vector.shape_cast %12 : vector<128xf32> to vector<128x1xf32>
    %14 = arith.maximumf %11, %13 : vector<128x1xf32>
    %15 = arith.subf %11, %14 : vector<128x1xf32>
    %16 = math.exp %15 : vector<128x1xf32>
    %17 = vector.broadcast %14 : vector<128x1xf32> to vector<128x128xf32>
    %18 = arith.subf %10, %17 : vector<128x128xf32>
    %19 = math.exp %18 : vector<128x128xf32>
    %c0_5 = arith.constant 0 : index
    %c0_6 = arith.constant 0 : index
    %20 = vector.load %arg6[%c0_5, %c0_6] : memref<128x1xf32, #tpu.memory_space<vmem>>, vector<128x1xf32>
    %21 = arith.mulf %16, %20 : vector<128x1xf32>
    %cst_7 = arith.constant dense<0.000000e+00> : vector<128xf32>
    %22 = vector.multi_reduction <add>, %19, %cst_7 [1] : vector<128x128xf32> to vector<128xf32>
    %23 = vector.shape_cast %22 : vector<128xf32> to vector<128x1xf32>
    %24 = arith.addf %21, %23 : vector<128x1xf32>
    %c0_8 = arith.constant 0 : index
    %c0_9 = arith.constant 0 : index
    %25 = vector.load %arg6[%c0_8, %c0_9] : memref<128x1xf32, #tpu.memory_space<vmem>>, vector<128x1xf32>
    tpu.vector_store %arg6[%c0_8, %c0_9], %24 {strides = array<i32>} : memref<128x1xf32, #tpu.memory_space<vmem>>, vector<128x1xf32>,
    %c0_10 = arith.constant 0 : index
    %c0_11 = arith.constant 0 : index
    %26 = vector.load %arg5[%c0_10, %c0_11] : memref<128x1xf32, #tpu.memory_space<vmem>>, vector<128x1xf32>
    tpu.vector_store %arg5[%c0_10, %c0_11], %14 {strides = array<i32>} : memref<128x1xf32, #tpu.memory_space<vmem>>, vector<128x1xf32>,
    %c0_12 = arith.constant 0 : index
    %c0_13 = arith.constant 0 : index
    %27 = vector.load %arg3[%c0_12, %c0_13] : memref<128x1xi32, #tpu.memory_space<vmem>>, vector<128x1xi32>
    %c128_i32_14 = arith.constant 128 : i32
    %28 = arith.muli %arg1, %c128_i32_14 : i32
    %29 = vector.broadcast %28 : i32 to vector<128x1xi32>
    %30 = arith.subi %27, %29 : vector<128x1xi32>
    %c0_15 = arith.constant 0 : index
    %c0_16 = arith.constant 0 : index
    %31 = vector.load %arg7[%c0_15, %c0_16] : memref<128x1xf32, #tpu.memory_space<vmem>>, vector<128x1xf32>
    %32 = vector.broadcast %30 : vector<128x1xi32> to vector<128x128xi32>
    %33 = arith.cmpi eq, %4, %32 : vector<128x128xi32>
    %cst_17 = arith.constant 0.000000e+00 : f32
    %34 = vector.broadcast %cst_17 : f32 to vector<128x128xf32>
    %35 = arith.select %33, %10, %34 : vector<128x128xi1>, vector<128x128xf32>
    %cst_18 = arith.constant dense<0.000000e+00> : vector<128xf32>
    %36 = vector.multi_reduction <add>, %35, %cst_18 [1] : vector<128x128xf32> to vector<128xf32>
    %37 = vector.shape_cast %36 : vector<128xf32> to vector<128x1xf32>
    %38 = arith.addf %31, %37 : vector<128x1xf32>
    %c0_19 = arith.constant 0 : index
    %c0_20 = arith.constant 0 : index
    %39 = vector.load %arg7[%c0_19, %c0_20] : memref<128x1xf32, #tpu.memory_space<vmem>>, vector<128x1xf32>
    tpu.vector_store %arg7[%c0_19, %c0_20], %38 {strides = array<i32>} : memref<128x1xf32, #tpu.memory_space<vmem>>, vector<128x1xf32>,
    %c0_i32_21 = arith.constant 0 : i32
    %40 = arith.cmpi eq, %arg1, %c0_i32_21 : i32
    %41 = arith.extui %40 : i1 to i32
    %c0_i32_22 = arith.constant 0 : i32
    %42 = arith.cmpi ne, %41, %c0_i32_22 : i32
    scf.if %42 {
      %c0_23 = arith.constant 0 : index
      %c0_24 = arith.constant 0 : index
      %43 = vector.load %arg5[%c0_23, %c0_24] : memref<128x1xf32, #tpu.memory_space<vmem>>, vector<128x1xf32>
      %c0_25 = arith.constant 0 : index
      %c0_26 = arith.constant 0 : index
      %44 = vector.load %arg6[%c0_25, %c0_26] : memref<128x1xf32, #tpu.memory_space<vmem>>, vector<128x1xf32>
      %45 = math.log %44 : vector<128x1xf32>
      %46 = arith.addf %43, %45 : vector<128x1xf32>
      %c128_i32_27 = arith.constant 128 : i32
      %47 = arith.muli %arg0, %c128_i32_27 : i32
      %48 = tpu.iota {dimensions = array<i32: 0>} : vector<128x1xi32>
      %49 = vector.broadcast %47 : i32 to vector<128x1xi32>
      %50 = arith.addi %49, %48 : vector<128x1xi32>
      %c16_i32 = arith.constant 16 : i32
      %51 = vector.broadcast %c16_i32 : i32 to vector<128x1xi32>
      %52 = arith.cmpi slt, %50, %51 : vector<128x1xi32>
      %c0_28 = arith.constant 0 : index
      %c0_29 = arith.constant 0 : index
      %53 = vector.load %arg7[%c0_28, %c0_29] : memref<128x1xf32, #tpu.memory_space<vmem>>, vector<128x1xf32>
      %54 = arith.subf %46, %53 : vector<128x1xf32>
      %cst_30 = arith.constant 0.000000e+00 : f32
      %55 = vector.broadcast %cst_30 : f32 to vector<128x1xf32>
      %56 = arith.select %52, %54, %55 : vector<128x1xi1>, vector<128x1xf32>
      %cst_31 = arith.constant dense<0.000000e+00> : vector<1xf32>
      %57 = vector.multi_reduction <add>, %56, %cst_31 [0] : vector<128x1xf32> to vector<1xf32>
      %58 = vector.shape_cast %57 : vector<1xf32> to vector<1x1xf32>
      %59 = vector.shape_cast %58 : vector<1x1xf32> to vector<1x1xf32>
      %60 = vector.broadcast %59 : vector<1x1xf32> to vector<8x128xf32>
      %c0_32 = arith.constant 0 : index
      %c0_33 = arith.constant 0 : index
      %61 = vector.load %arg4[%c0_32, %c0_33] : memref<8x128xf32, #tpu.memory_space<vmem>>, vector<8x128xf32>
      tpu.vector_store %arg4[%c0_32, %c0_33], %60 {strides = array<i32>} : memref<8x128xf32, #tpu.memory_space<vmem>>, vector<8x128xf32>,
    } else {
    }
    return
  }
  func.func @transform_0(%arg0: i32, %arg1: i32) -> (i32, i32) {
    %c0_i32 = arith.constant 0 : i32
    return %arg0, %arg1 : i32, i32
  }
  func.func @transform_1(%arg0: i32, %arg1: i32) -> (i32, i32) {
    %c0_i32 = arith.constant 0 : i32
    %c0_i32_0 = arith.constant 0 : i32
    return %arg0, %c0_i32 : i32, i32
  }
  func.func @transform_2(%arg0: i32, %arg1: i32) -> (i32, i32) {
    %c0_i32 = arith.constant 0 : i32
    %c0_i32_0 = arith.constant 0 : i32
    return %arg0, %c0_i32 : i32, i32
  }
}

</mosaic_0001>

<llo_original>
// kernel: tpu_custom_call.1
$region0: #{tpu_custom_call.1}
  #allocation0 [shape = 'u32[]', space=smem, size = 0x4, offset = 0x4, fixed_abs, tag = 'smem constant byte address 0x4 - core index']
  #allocation1 [shape = 'u32[144,128]{1,0:T(1,128)}', space=vmem, size = 0x12000, scoped, tag = 'internal scratch']
  #allocation2 [shape = 'f32[128,1]{1,0:T(8,128)}', space=vmem, size = 0x10000, scoped, tag = 'scratch operand']
  #allocation3 [shape = 'f32[128,1]{1,0:T(8,128)}', space=vmem, size = 0x10000, scoped, tag = 'scratch operand']
  #allocation4 [shape = 'f32[128,1]{1,0:T(8,128)}', space=vmem, size = 0x10000, scoped, tag = 'scratch operand']
  %s0 = inlined_call_operand.vmem [shape: f32[16,32], index: 0, kind: input, shape index: {}]
  %s1 = inlined_call_operand.vmem [shape: s32[16,1], index: 1, kind: input, shape index: {}]
  %s2 = inlined_call_operand.hbm [shape: f32[8,128], index: 2, kind: output, shape index: {}]
  %s3 = sld [smem:[#allocation0]]
  $region26: #{tpu_custom_call.1} parent=0
    _
  %s5 = ssub.s32 1, %s3
  %s6 = scalar_select 0, %s5, %s3
  $region1: #{tpu_custom_call.1} parent=0
    #allocation5 [shape = 'u8[4096]{0}', space=vmem, size = 0x1000, scoped, tag = 'output window, operand 0, single buffered']
    #allocation6 [shape = 's32[1]{0}', space=sflag, size = 0x4, scoped, tag = 'scoped memory for tpu_custom_call.1']
    %7 = vsyncpa [#allocation6], 0
    // Predicated region
    $region2: #{tpu_custom_call.1} parent=1 // pred_check
      _
    $region3: #{tpu_custom_call.1} parent=1 // pred_check_branch
      %9 = sbr.rel (0) target = $region5
    $region4: #{tpu_custom_call.1} parent=1 // pred_region
      _
    $region5: #{tpu_custom_call.1} parent=1 // pred_fallthru
      _
    // Predicated region
    $region6: #{tpu_custom_call.1} parent=1 // pred_check
      _
    $region7: #{tpu_custom_call.1} parent=1 // pred_check_branch
      %11 = sbr.rel (0) target = $region9
    $region8: #{tpu_custom_call.1} parent=1 // pred_region
      _
    $region9: #{tpu_custom_call.1} parent=1 // pred_fallthru
      _
    %p12 = scmp.eq.s32.totalorder 0, 0
    // Predicated region
    $region10: #{tpu_custom_call.1} parent=1 // pred_check
      %p13 = pneg %p12
    $region11: #{tpu_custom_call.1} parent=1 // pred_check_branch
      %15 = sbr.rel (%p13) target = $region13
    $region12: #{tpu_custom_call.1} parent=1 // pred_region
      %vm16 = vcmask 7168
      %17 = vst.msk [vmem:[#allocation2] sm:$0xff] %vm16, -3.4028235e+38
      %18 = vst.msk [vmem:[#allocation2 + $0x8] sm:$0xff] %vm16, -3.4028235e+38
      %19 = vst.msk [vmem:[#allocation2 + $0x10] sm:$0xff] %vm16, -3.4028235e+38
      %20 = vst.msk [vmem:[#allocation2 + $0x18] sm:$0xff] %vm16, -3.4028235e+38
      %21 = vst.msk [vmem:[#allocation2 + $0x20] sm:$0xff] %vm16, -3.4028235e+38
      %22 = vst.msk [vmem:[#allocation2 + $0x28] sm:$0xff] %vm16, -3.4028235e+38
      %23 = vst.msk [vmem:[#allocation2 + $0x30] sm:$0xff] %vm16, -3.4028235e+38
      %24 = vst.msk [vmem:[#allocation2 + $0x38] sm:$0xff] %vm16, -3.4028235e+38
      %25 = vst.msk [vmem:[#allocation2 + $0x40] sm:$0xff] %vm16, -3.4028235e+38
      %26 = vst.msk [vmem:[#allocation2 + $0x48] sm:$0xff] %vm16, -3.4028235e+38
      %27 = vst.msk [vmem:[#allocation2 + $0x50] sm:$0xff] %vm16, -3.4028235e+38
      %28 = vst.msk [vmem:[#allocation2 + $0x58] sm:$0xff] %vm16, -3.4028235e+38
      %29 = vst.msk [vmem:[#allocation2 + $0x60] sm:$0xff] %vm16, -3.4028235e+38
      %30 = vst.msk [vmem:[#allocation2 + $0x68] sm:$0xff] %vm16, -3.4028235e+38
      %31 = vst.msk [vmem:[#allocation2 + $0x70] sm:$0xff] %vm16, -3.4028235e+38
      %32 = vst.msk [vmem:[#allocation2 + $0x78] sm:$0xff] %vm16, -3.4028235e+38
      %33 = vst.msk [vmem:[#allocation3] sm:$0xff] %vm16, 0.0
      %34 = vst.msk [vmem:[#allocation3 + $0x8] sm:$0xff] %vm16, 0.0
      %35 = vst.msk [vmem:[#allocation3 + $0x10] sm:$0xff] %vm16, 0.0
      %36 = vst.msk [vmem:[#allocation3 + $0x18] sm:$0xff] %vm16, 0.0
      %37 = vst.msk [vmem:[#allocation3 + $0x20] sm:$0xff] %vm16, 0.0
      %38 = vst.msk [vmem:[#allocation3 + $0x28] sm:$0xff] %vm16, 0.0
      %39 = vst.msk [vmem:[#allocation3 + $0x30] sm:$0xff] %vm16, 0.0
      %40 = vst.msk [vmem:[#allocation3 + $0x38] sm:$0xff] %vm16, 0.0
      %41 = vst.msk [vmem:[#allocation3 + $0x40] sm:$0xff] %vm16, 0.0
      %42 = vst.msk [vmem:[#allocation3 + $0x48] sm:$0xff] %vm16, 0.0
      %43 = vst.msk [vmem:[#allocation3 + $0x50] sm:$0xff] %vm16, 0.0
      %44 = vst.msk [vmem:[#allocation3 + $0x58] sm:$0xff] %vm16, 0.0
      %45 = vst.msk [vmem:[#allocation3 + $0x60] sm:$0xff] %vm16, 0.0
      %46 = vst.msk [vmem:[#allocation3 + $0x68] sm:$0xff] %vm16, 0.0
      %47 = vst.msk [vmem:[#allocation3 + $0x70] sm:$0xff] %vm16, 0.0
      %48 = vst.msk [vmem:[#allocation3 + $0x78] sm:$0xff] %vm16, 0.0
      %49 = vst.msk [vmem:[#allocation4] sm:$0xff] %vm16, 0.0
      %50 = vst.msk [vmem:[#allocation4 + $0x8] sm:$0xff] %vm16, 0.0
      %51 = vst.msk [vmem:[#allocation4 + $0x10] sm:$0xff] %vm16, 0.0
      %52 = vst.msk [vmem:[#allocation4 + $0x18] sm:$0xff] %vm16, 0.0
      %53 = vst.msk [vmem:[#allocation4 + $0x20] sm:$0xff] %vm16, 0.0
      %54 = vst.msk [vmem:[#allocation4 + $0x28] sm:$0xff] %vm16, 0.0
      %55 = vst.msk [vmem:[#allocation4 + $0x30] sm:$0xff] %vm16, 0.0
      %56 = vst.msk [vmem:[#allocation4 + $0x38] sm:$0xff] %vm16, 0.0
      %57 = vst.msk [vmem:[#allocation4 + $0x40] sm:$0xff] %vm16, 0.0
      %58 = vst.msk [vmem:[#allocation4 + $0x48] sm:$0xff] %vm16, 0.0
      %59 = vst.msk [vmem:[#allocation4 + $0x50] sm:$0xff] %vm16, 0.0
      %60 = vst.msk [vmem:[#allocation4 + $0x58] sm:$0xff] %vm16, 0.0
      %61 = vst.msk [vmem:[#allocation4 + $0x60] sm:$0xff] %vm16, 0.0
      %62 = vst.msk [vmem:[#allocation4 + $0x68] sm:$0xff] %vm16, 0.0
      %63 = vst.msk [vmem:[#allocation4 + $0x70] sm:$0xff] %vm16, 0.0
      %64 = vst.msk [vmem:[#allocation4 + $0x78] sm:$0xff] %vm16, 0.0
    $region13: #{tpu_custom_call.1} parent=1 // pred_fallthru
      _
    %v65 = vld [vmem:[%s0] sm:$0xff]
    %v66 = vld [vmem:[%s0 + $0x8] sm:$0xff]
    %v67 = vld [vmem:[%s0 + $0x10] sm:$0xff]
    %v68 = vld [vmem:[%s0 + $0x18] sm:$0xff]
    %v69 = vld [vmem:[%s0 + $0x20] sm:$0xff]
    %v70 = vld [vmem:[%s0 + $0x28] sm:$0xff]
    %v71 = vld [vmem:[%s0 + $0x30] sm:$0xff]
    %v72 = vld [vmem:[%s0 + $0x38] sm:$0xff]
    %v73 = vld [vmem:[%s0 + $0x40] sm:$0xff]
    %v74 = vld [vmem:[%s0 + $0x48] sm:$0xff]
    %v75 = vld [vmem:[%s0 + $0x50] sm:$0xff]
    %v76 = vld [vmem:[%s0 + $0x58] sm:$0xff]
    %v77 = vld [vmem:[%s0 + $0x60] sm:$0xff]
    %v78 = vld [vmem:[%s0 + $0x68] sm:$0xff]
    %v79 = vld [vmem:[%s0 + $0x70] sm:$0xff]
    %v80 = vld [vmem:[%s0 + $0x78] sm:$0xff]
    %v81 = vlaneseq
    %v82 = vand.u32 %v81, 127
    %s83 = smul.u32 0, 128
    %s84 = ssub.s32 32, %s83
    %v85 = vstv %s84
    %vm86 = vcmp.lt.s32.totalorder %v82, %v85
    %v87 = vsel %vm86, %v65, -3.4028235e+38
    %v88 = vsel %vm86, %v66, -3.4028235e+38
    %v89 = vsel %vm86, %v67, -3.4028235e+38
    %v90 = vsel %vm86, %v68, -3.4028235e+38
    %v91 = vsel %vm86, %v69, -3.4028235e+38
    %v92 = vsel %vm86, %v70, -3.4028235e+38
    %v93 = vsel %vm86, %v71, -3.4028235e+38
    %v94 = vsel %vm86, %v72, -3.4028235e+38
    %v95 = vsel %vm86, %v73, -3.4028235e+38
    %v96 = vsel %vm86, %v74, -3.4028235e+38
    %v97 = vsel %vm86, %v75, -3.4028235e+38
    %v98 = vsel %vm86, %v76, -3.4028235e+38
    %v99 = vsel %vm86, %v77, -3.4028235e+38
    %v100 = vsel %vm86, %v78, -3.4028235e+38
    %v101 = vsel %vm86, %v79, -3.4028235e+38
    %v102 = vsel %vm86, %v80, -3.4028235e+38
    %v103 = vld [vmem:[#allocation2] sm:$0xff]
    %v104 = vld [vmem:[#allocation2 + $0x8] sm:$0xff]
    %v105 = vld [vmem:[#allocation2 + $0x10] sm:$0xff]
    %v106 = vld [vmem:[#allocation2 + $0x18] sm:$0xff]
    %v107 = vld [vmem:[#allocation2 + $0x20] sm:$0xff]
    %v108 = vld [vmem:[#allocation2 + $0x28] sm:$0xff]
    %v109 = vld [vmem:[#allocation2 + $0x30] sm:$0xff]
    %v110 = vld [vmem:[#allocation2 + $0x38] sm:$0xff]
    %v111 = vld [vmem:[#allocation2 + $0x40] sm:$0xff]
    %v112 = vld [vmem:[#allocation2 + $0x48] sm:$0xff]
    %v113 = vld [vmem:[#allocation2 + $0x50] sm:$0xff]
    %v114 = vld [vmem:[#allocation2 + $0x58] sm:$0xff]
    %v115 = vld [vmem:[#allocation2 + $0x60] sm:$0xff]
    %v116 = vld [vmem:[#allocation2 + $0x68] sm:$0xff]
    %v117 = vld [vmem:[#allocation2 + $0x70] sm:$0xff]
    %v118 = vld [vmem:[#allocation2 + $0x78] sm:$0xff]
    %119 = vmax.xlane.f32.xlu0 %v87
    %v120 = vpop.xlane.xlu0 %119
    %121 = vmax.xlane.f32.xlu0 %v88
    %v122 = vpop.xlane.xlu0 %121
    %123 = vmax.xlane.f32.xlu0 %v89
    %v124 = vpop.xlane.xlu0 %123
    %125 = vmax.xlane.f32.xlu0 %v90
    %v126 = vpop.xlane.xlu0 %125
    %127 = vmax.xlane.f32.xlu0 %v91
    %v128 = vpop.xlane.xlu0 %127
    %129 = vmax.xlane.f32.xlu0 %v92
    %v130 = vpop.xlane.xlu0 %129
    %131 = vmax.xlane.f32.xlu0 %v93
    %v132 = vpop.xlane.xlu0 %131
    %133 = vmax.xlane.f32.xlu0 %v94
    %v134 = vpop.xlane.xlu0 %133
    %135 = vmax.xlane.f32.xlu0 %v95
    %v136 = vpop.xlane.xlu0 %135
    %137 = vmax.xlane.f32.xlu0 %v96
    %v138 = vpop.xlane.xlu0 %137
    %139 = vmax.xlane.f32.xlu0 %v97
    %v140 = vpop.xlane.xlu0 %139
    %141 = vmax.xlane.f32.xlu0 %v98
    %v142 = vpop.xlane.xlu0 %141
    %143 = vmax.xlane.f32.xlu0 %v99
    %v144 = vpop.xlane.xlu0 %143
    %145 = vmax.xlane.f32.xlu0 %v100
    %v146 = vpop.xlane.xlu0 %145
    %147 = vmax.xlane.f32.xlu0 %v101
    %v148 = vpop.xlane.xlu0 %147
    %149 = vmax.xlane.f32.xlu0 %v102
    %v150 = vpop.xlane.xlu0 %149
    %v151 = vmax.f32 %v103, %v120
    %v152 = vmax.f32 %v104, %v122
    %v153 = vmax.f32 %v105, %v124
    %v154 = vmax.f32 %v106, %v126
    %v155 = vmax.f32 %v107, %v128
    %v156 = vmax.f32 %v108, %v130
    %v157 = vmax.f32 %v109, %v132
    %v158 = vmax.f32 %v110, %v134
    %v159 = vmax.f32 %v111, %v136
    %v160 = vmax.f32 %v112, %v138
    %v161 = vmax.f32 %v113, %v140
    %v162 = vmax.f32 %v114, %v142
    %v163 = vmax.f32 %v115, %v144
    %v164 = vmax.f32 %v116, %v146
    %v165 = vmax.f32 %v117, %v148
    %v166 = vmax.f32 %v118, %v150
    %v167 = vsub.f32 %v103, %v151
    %v168 = vsub.f32 %v104, %v152
    %v169 = vsub.f32 %v105, %v153
    %v170 = vsub.f32 %v106, %v154
    %v171 = vsub.f32 %v107, %v155
    %v172 = vsub.f32 %v108, %v156
    %v173 = vsub.f32 %v109, %v157
    %v174 = vsub.f32 %v110, %v158
    %v175 = vsub.f32 %v111, %v159
    %v176 = vsub.f32 %v112, %v160
    %v177 = vsub.f32 %v113, %v161
    %v178 = vsub.f32 %v114, %v162
    %v179 = vsub.f32 %v115, %v163
    %v180 = vsub.f32 %v116, %v164
    %v181 = vsub.f32 %v117, %v165
    %v182 = vsub.f32 %v118, %v166
    %v183 = vmul.f32 %v167, 1.442695
    %v184 = vpow.pop %v183
    %v185 = vmul.f32 %v168, 1.442695
    %v186 = vpow.pop %v185
    %v187 = vmul.f32 %v169, 1.442695
    %v188 = vpow.pop %v187
    %v189 = vmul.f32 %v170, 1.442695
    %v190 = vpow.pop %v189
    %v191 = vmul.f32 %v171, 1.442695
    %v192 = vpow.pop %v191
    %v193 = vmul.f32 %v172, 1.442695
    %v194 = vpow.pop %v193
    %v195 = vmul.f32 %v173, 1.442695
    %v196 = vpow.pop %v195
    %v197 = vmul.f32 %v174, 1.442695
    %v198 = vpow.pop %v197
    %v199 = vmul.f32 %v175, 1.442695
    %v200 = vpow.pop %v199
    %v201 = vmul.f32 %v176, 1.442695
    %v202 = vpow.pop %v201
    %v203 = vmul.f32 %v177, 1.442695
    %v204 = vpow.pop %v203
    %v205 = vmul.f32 %v178, 1.442695
    %v206 = vpow.pop %v205
    %v207 = vmul.f32 %v179, 1.442695
    %v208 = vpow.pop %v207
    %v209 = vmul.f32 %v180, 1.442695
    %v210 = vpow.pop %v209
    %v211 = vmul.f32 %v181, 1.442695
    %v212 = vpow.pop %v211
    %v213 = vmul.f32 %v182, 1.442695
    %v214 = vpow.pop %v213
    %216 = vset.pattern.permute.xlu0 0
    %217 = vperm.xlu0 %216, %v151
    %v218 = vpop.permute.xlu0 %217
    %221 = vset.pattern.permute.xlu0 0
    %222 = vperm.xlu0 %221, %v152
    %v223 = vpop.permute.xlu0 %222
    %226 = vset.pattern.permute.xlu0 0
    %227 = vperm.xlu0 %226, %v153
    %v228 = vpop.permute.xlu0 %227
    %231 = vset.pattern.permute.xlu0 0
    %232 = vperm.xlu0 %231, %v154
    %v233 = vpop.permute.xlu0 %232
    %236 = vset.pattern.permute.xlu0 0
    %237 = vperm.xlu0 %236, %v155
    %v238 = vpop.permute.xlu0 %237
    %241 = vset.pattern.permute.xlu0 0
    %242 = vperm.xlu0 %241, %v156
    %v243 = vpop.permute.xlu0 %242
    %246 = vset.pattern.permute.xlu0 0
    %247 = vperm.xlu0 %246, %v157
    %v248 = vpop.permute.xlu0 %247
    %251 = vset.pattern.permute.xlu0 0
    %252 = vperm.xlu0 %251, %v158
    %v253 = vpop.permute.xlu0 %252
    %256 = vset.pattern.permute.xlu0 0
    %257 = vperm.xlu0 %256, %v159
    %v258 = vpop.permute.xlu0 %257
    %261 = vset.pattern.permute.xlu0 0
    %262 = vperm.xlu0 %261, %v160
    %v263 = vpop.permute.xlu0 %262
    %266 = vset.pattern.permute.xlu0 0
    %267 = vperm.xlu0 %266, %v161
    %v268 = vpop.permute.xlu0 %267
    %271 = vset.pattern.permute.xlu0 0
    %272 = vperm.xlu0 %271, %v162
    %v273 = vpop.permute.xlu0 %272
    %276 = vset.pattern.permute.xlu0 0
    %277 = vperm.xlu0 %276, %v163
    %v278 = vpop.permute.xlu0 %277
    %281 = vset.pattern.permute.xlu0 0
    %282 = vperm.xlu0 %281, %v164
    %v283 = vpop.permute.xlu0 %282
    %286 = vset.pattern.permute.xlu0 0
    %287 = vperm.xlu0 %286, %v165
    %v288 = vpop.permute.xlu0 %287
    %291 = vset.pattern.permute.xlu0 0
    %292 = vperm.xlu0 %291, %v166
    %v293 = vpop.permute.xlu0 %292
    %v295 = vsub.f32 %v87, %v218
    %v296 = vsub.f32 %v88, %v223
    %v297 = vsub.f32 %v89, %v228
    %v298 = vsub.f32 %v90, %v233
    %v299 = vsub.f32 %v91, %v238
    %v300 = vsub.f32 %v92, %v243
    %v301 = vsub.f32 %v93, %v248
    %v302 = vsub.f32 %v94, %v253
    %v303 = vsub.f32 %v95, %v258
    %v304 = vsub.f32 %v96, %v263
    %v305 = vsub.f32 %v97, %v268
    %v306 = vsub.f32 %v98, %v273
    %v307 = vsub.f32 %v99, %v278
    %v308 = vsub.f32 %v100, %v283
    %v309 = vsub.f32 %v101, %v288
    %v310 = vsub.f32 %v102, %v293
    %v311 = vmul.f32 %v295, 1.442695
    %v312 = vpow.pop %v311
    %v313 = vmul.f32 %v296, 1.442695
    %v314 = vpow.pop %v313
    %v315 = vmul.f32 %v297, 1.442695
    %v316 = vpow.pop %v315
    %v317 = vmul.f32 %v298, 1.442695
    %v318 = vpow.pop %v317
    %v319 = vmul.f32 %v299, 1.442695
    %v320 = vpow.pop %v319
    %v321 = vmul.f32 %v300, 1.442695
    %v322 = vpow.pop %v321
    %v323 = vmul.f32 %v301, 1.442695
    %v324 = vpow.pop %v323
    %v325 = vmul.f32 %v302, 1.442695
    %v326 = vpow.pop %v325
    %v327 = vmul.f32 %v303, 1.442695
    %v328 = vpow.pop %v327
    %v329 = vmul.f32 %v304, 1.442695
    %v330 = vpow.pop %v329
    %v331 = vmul.f32 %v305, 1.442695
    %v332 = vpow.pop %v331
    %v333 = vmul.f32 %v306, 1.442695
    %v334 = vpow.pop %v333
    %v335 = vmul.f32 %v307, 1.442695
    %v336 = vpow.pop %v335
    %v337 = vmul.f32 %v308, 1.442695
    %v338 = vpow.pop %v337
    %v339 = vmul.f32 %v309, 1.442695
    %v340 = vpow.pop %v339
    %v341 = vmul.f32 %v310, 1.442695
    %v342 = vpow.pop %v341
    %v343 = vld [vmem:[#allocation3] sm:$0xff]
    %v344 = vld [vmem:[#allocation3 + $0x8] sm:$0xff]
    %v345 = vld [vmem:[#allocation3 + $0x10] sm:$0xff]
    %v346 = vld [vmem:[#allocation3 + $0x18] sm:$0xff]
    %v347 = vld [vmem:[#allocation3 + $0x20] sm:$0xff]
    %v348 = vld [vmem:[#allocation3 + $0x28] sm:$0xff]
    %v349 = vld [vmem:[#allocation3 + $0x30] sm:$0xff]
    %v350 = vld [vmem:[#allocation3 + $0x38] sm:$0xff]
    %v351 = vld [vmem:[#allocation3 + $0x40] sm:$0xff]
    %v352 = vld [vmem:[#allocation3 + $0x48] sm:$0xff]
    %v353 = vld [vmem:[#allocation3 + $0x50] sm:$0xff]
    %v354 = vld [vmem:[#allocation3 + $0x58] sm:$0xff]
    %v355 = vld [vmem:[#allocation3 + $0x60] sm:$0xff]
    %v356 = vld [vmem:[#allocation3 + $0x68] sm:$0xff]
    %v357 = vld [vmem:[#allocation3 + $0x70] sm:$0xff]
    %v358 = vld [vmem:[#allocation3 + $0x78] sm:$0xff]
    %v359 = vmul.f32 %v184, %v343
    %v360 = vmul.f32 %v186, %v344
    %v361 = vmul.f32 %v188, %v345
    %v362 = vmul.f32 %v190, %v346
    %v363 = vmul.f32 %v192, %v347
    %v364 = vmul.f32 %v194, %v348
    %v365 = vmul.f32 %v196, %v349
    %v366 = vmul.f32 %v198, %v350
    %v367 = vmul.f32 %v200, %v351
    %v368 = vmul.f32 %v202, %v352
    %v369 = vmul.f32 %v204, %v353
    %v370 = vmul.f32 %v206, %v354
    %v371 = vmul.f32 %v208, %v355
    %v372 = vmul.f32 %v210, %v356
    %v373 = vmul.f32 %v212, %v357
    %v374 = vmul.f32 %v214, %v358
    %375 = vadd.xlane.f32.xlu0 %v312
    %v376 = vpop.xlane.xlu0 %375
    %377 = vadd.xlane.f32.xlu0 %v314
    %v378 = vpop.xlane.xlu0 %377
    %379 = vadd.xlane.f32.xlu0 %v316
    %v380 = vpop.xlane.xlu0 %379
    %381 = vadd.xlane.f32.xlu0 %v318
    %v382 = vpop.xlane.xlu0 %381
    %383 = vadd.xlane.f32.xlu0 %v320
    %v384 = vpop.xlane.xlu0 %383
    %385 = vadd.xlane.f32.xlu0 %v322
    %v386 = vpop.xlane.xlu0 %385
    %387 = vadd.xlane.f32.xlu0 %v324
    %v388 = vpop.xlane.xlu0 %387
    %389 = vadd.xlane.f32.xlu0 %v326
    %v390 = vpop.xlane.xlu0 %389
    %391 = vadd.xlane.f32.xlu0 %v328
    %v392 = vpop.xlane.xlu0 %391
    %393 = vadd.xlane.f32.xlu0 %v330
    %v394 = vpop.xlane.xlu0 %393
    %395 = vadd.xlane.f32.xlu0 %v332
    %v396 = vpop.xlane.xlu0 %395
    %397 = vadd.xlane.f32.xlu0 %v334
    %v398 = vpop.xlane.xlu0 %397
    %399 = vadd.xlane.f32.xlu0 %v336
    %v400 = vpop.xlane.xlu0 %399
    %401 = vadd.xlane.f32.xlu0 %v338
    %v402 = vpop.xlane.xlu0 %401
    %403 = vadd.xlane.f32.xlu0 %v340
    %v404 = vpop.xlane.xlu0 %403
    %405 = vadd.xlane.f32.xlu0 %v342
    %v406 = vpop.xlane.xlu0 %405
    %v407 = vadd.f32 %v359, %v376
    %v408 = vadd.f32 %v360, %v378
    %v409 = vadd.f32 %v361, %v380
    %v410 = vadd.f32 %v362, %v382
    %v411 = vadd.f32 %v363, %v384
    %v412 = vadd.f32 %v364, %v386
    %v413 = vadd.f32 %v365, %v388
    %v414 = vadd.f32 %v366, %v390
    %v415 = vadd.f32 %v367, %v392
    %v416 = vadd.f32 %v368, %v394
    %v417 = vadd.f32 %v369, %v396
    %v418 = vadd.f32 %v370, %v398
    %v419 = vadd.f32 %v371, %v400
    %v420 = vadd.f32 %v372, %v402
    %v421 = vadd.f32 %v373, %v404
    %v422 = vadd.f32 %v374, %v406
    %vm423 = vcmask 7168
    %424 = vst.msk [vmem:[#allocation3] sm:$0xff] %vm423, %v407
    %425 = vst.msk [vmem:[#allocation3 + $0x8] sm:$0xff] %vm423, %v408
    %426 = vst.msk [vmem:[#allocation3 + $0x10] sm:$0xff] %vm423, %v409
    %427 = vst.msk [vmem:[#allocation3 + $0x18] sm:$0xff] %vm423, %v410
    %428 = vst.msk [vmem:[#allocation3 + $0x20] sm:$0xff] %vm423, %v411
    %429 = vst.msk [vmem:[#allocation3 + $0x28] sm:$0xff] %vm423, %v412
    %430 = vst.msk [vmem:[#allocation3 + $0x30] sm:$0xff] %vm423, %v413
    %431 = vst.msk [vmem:[#allocation3 + $0x38] sm:$0xff] %vm423, %v414
    %432 = vst.msk [vmem:[#allocation3 + $0x40] sm:$0xff] %vm423, %v415
    %433 = vst.msk [vmem:[#allocation3 + $0x48] sm:$0xff] %vm423, %v416
    %434 = vst.msk [vmem:[#allocation3 + $0x50] sm:$0xff] %vm423, %v417
    %435 = vst.msk [vmem:[#allocation3 + $0x58] sm:$0xff] %vm423, %v418
    %436 = vst.msk [vmem:[#allocation3 + $0x60] sm:$0xff] %vm423, %v419
    %437 = vst.msk [vmem:[#allocation3 + $0x68] sm:$0xff] %vm423, %v420
    %438 = vst.msk [vmem:[#allocation3 + $0x70] sm:$0xff] %vm423, %v421
    %439 = vst.msk [vmem:[#allocation3 + $0x78] sm:$0xff] %vm423, %v422
    %440 = vst.msk [vmem:[#allocation2] sm:$0xff] %vm423, %v151
    %441 = vst.msk [vmem:[#allocation2 + $0x8] sm:$0xff] %vm423, %v152
    %442 = vst.msk [vmem:[#allocation2 + $0x10] sm:$0xff] %vm423, %v153
    %443 = vst.msk [vmem:[#allocation2 + $0x18] sm:$0xff] %vm423, %v154
    %444 = vst.msk [vmem:[#allocation2 + $0x20] sm:$0xff] %vm423, %v155
    %445 = vst.msk [vmem:[#allocation2 + $0x28] sm:$0xff] %vm423, %v156
    %446 = vst.msk [vmem:[#allocation2 + $0x30] sm:$0xff] %vm423, %v157
    %447 = vst.msk [vmem:[#allocation2 + $0x38] sm:$0xff] %vm423, %v158
    %448 = vst.msk [vmem:[#allocation2 + $0x40] sm:$0xff] %vm423, %v159
    %449 = vst.msk [vmem:[#allocation2 + $0x48] sm:$0xff] %vm423, %v160
    %450 = vst.msk [vmem:[#allocation2 + $0x50] sm:$0xff] %vm423, %v161
    %451 = vst.msk [vmem:[#allocation2 + $0x58] sm:$0xff] %vm423, %v162
    %452 = vst.msk [vmem:[#allocation2 + $0x60] sm:$0xff] %vm423, %v163
    %453 = vst.msk [vmem:[#allocation2 + $0x68] sm:$0xff] %vm423, %v164
    %454 = vst.msk [vmem:[#allocation2 + $0x70] sm:$0xff] %vm423, %v165
    %455 = vst.msk [vmem:[#allocation2 + $0x78] sm:$0xff] %vm423, %v166
    %v456 = vld [vmem:[%s1] sm:$0xff]
    %v457 = vld [vmem:[%s1 + $0x8] sm:$0xff]
    %v458 = vld [vmem:[%s1 + $0x10] sm:$0xff]
    %v459 = vld [vmem:[%s1 + $0x18] sm:$0xff]
    %v460 = vld [vmem:[%s1 + $0x20] sm:$0xff]
    %v461 = vld [vmem:[%s1 + $0x28] sm:$0xff]
    %v462 = vld [vmem:[%s1 + $0x30] sm:$0xff]
    %v463 = vld [vmem:[%s1 + $0x38] sm:$0xff]
    %v464 = vld [vmem:[%s1 + $0x40] sm:$0xff]
    %v465 = vld [vmem:[%s1 + $0x48] sm:$0xff]
    %v466 = vld [vmem:[%s1 + $0x50] sm:$0xff]
    %v467 = vld [vmem:[%s1 + $0x58] sm:$0xff]
    %v468 = vld [vmem:[%s1 + $0x60] sm:$0xff]
    %v469 = vld [vmem:[%s1 + $0x68] sm:$0xff]
    %v470 = vld [vmem:[%s1 + $0x70] sm:$0xff]
    %v471 = vld [vmem:[%s1 + $0x78] sm:$0xff]
    %v472 = vstv %s83
    %v473 = vsub.s32 %v456, %v472
    %v474 = vsub.s32 %v457, %v472
    %v475 = vsub.s32 %v458, %v472
    %v476 = vsub.s32 %v459, %v472
    %v477 = vsub.s32 %v460, %v472
    %v478 = vsub.s32 %v461, %v472
    %v479 = vsub.s32 %v462, %v472
    %v480 = vsub.s32 %v463, %v472
    %v481 = vsub.s32 %v464, %v472
    %v482 = vsub.s32 %v465, %v472
    %v483 = vsub.s32 %v466, %v472
    %v484 = vsub.s32 %v467, %v472
    %v485 = vsub.s32 %v468, %v472
    %v486 = vsub.s32 %v469, %v472
    %v487 = vsub.s32 %v470, %v472
    %v488 = vsub.s32 %v471, %v472
    %v489 = vld [vmem:[#allocation4] sm:$0xff]
    %v490 = vld [vmem:[#allocation4 + $0x8] sm:$0xff]
    %v491 = vld [vmem:[#allocation4 + $0x10] sm:$0xff]
    %v492 = vld [vmem:[#allocation4 + $0x18] sm:$0xff]
    %v493 = vld [vmem:[#allocation4 + $0x20] sm:$0xff]
    %v494 = vld [vmem:[#allocation4 + $0x28] sm:$0xff]
    %v495 = vld [vmem:[#allocation4 + $0x30] sm:$0xff]
    %v496 = vld [vmem:[#allocation4 + $0x38] sm:$0xff]
    %v497 = vld [vmem:[#allocation4 + $0x40] sm:$0xff]
    %v498 = vld [vmem:[#allocation4 + $0x48] sm:$0xff]
    %v499 = vld [vmem:[#allocation4 + $0x50] sm:$0xff]
    %v500 = vld [vmem:[#allocation4 + $0x58] sm:$0xff]
    %v501 = vld [vmem:[#allocation4 + $0x60] sm:$0xff]
    %v502 = vld [vmem:[#allocation4 + $0x68] sm:$0xff]
    %v503 = vld [vmem:[#allocation4 + $0x70] sm:$0xff]
    %v504 = vld [vmem:[#allocation4 + $0x78] sm:$0xff]
    %505 = vset.pattern.permute.xlu0 0
    %506 = vperm.xlu0 %505, %v473
    %v507 = vpop.permute.xlu0 %506
    %508 = vset.pattern.permute.xlu0 0
    %509 = vperm.xlu0 %508, %v474
    %v510 = vpop.permute.xlu0 %509
    %511 = vset.pattern.permute.xlu0 0
    %512 = vperm.xlu0 %511, %v475
    %v513 = vpop.permute.xlu0 %512
    %514 = vset.pattern.permute.xlu0 0
    %515 = vperm.xlu0 %514, %v476
    %v516 = vpop.permute.xlu0 %515
    %517 = vset.pattern.permute.xlu0 0
    %518 = vperm.xlu0 %517, %v477
    %v519 = vpop.permute.xlu0 %518
    %520 = vset.pattern.permute.xlu0 0
    %521 = vperm.xlu0 %520, %v478
    %v522 = vpop.permute.xlu0 %521
    %523 = vset.pattern.permute.xlu0 0
    %524 = vperm.xlu0 %523, %v479
    %v525 = vpop.permute.xlu0 %524
    %526 = vset.pattern.permute.xlu0 0
    %527 = vperm.xlu0 %526, %v480
    %v528 = vpop.permute.xlu0 %527
    %529 = vset.pattern.permute.xlu0 0
    %530 = vperm.xlu0 %529, %v481
    %v531 = vpop.permute.xlu0 %530
    %532 = vset.pattern.permute.xlu0 0
    %533 = vperm.xlu0 %532, %v482
    %v534 = vpop.permute.xlu0 %533
    %535 = vset.pattern.permute.xlu0 0
    %536 = vperm.xlu0 %535, %v483
    %v537 = vpop.permute.xlu0 %536
    %538 = vset.pattern.permute.xlu0 0
    %539 = vperm.xlu0 %538, %v484
    %v540 = vpop.permute.xlu0 %539
    %541 = vset.pattern.permute.xlu0 0
    %542 = vperm.xlu0 %541, %v485
    %v543 = vpop.permute.xlu0 %542
    %544 = vset.pattern.permute.xlu0 0
    %545 = vperm.xlu0 %544, %v486
    %v546 = vpop.permute.xlu0 %545
    %547 = vset.pattern.permute.xlu0 0
    %548 = vperm.xlu0 %547, %v487
    %v549 = vpop.permute.xlu0 %548
    %550 = vset.pattern.permute.xlu0 0
    %551 = vperm.xlu0 %550, %v488
    %v552 = vpop.permute.xlu0 %551
    %vm553 = vcmp.eq.s32.totalorder %v82, %v507
    %vm554 = vcmp.eq.s32.totalorder %v82, %v510
    %vm555 = vcmp.eq.s32.totalorder %v82, %v513
    %vm556 = vcmp.eq.s32.totalorder %v82, %v516
    %vm557 = vcmp.eq.s32.totalorder %v82, %v519
    %vm558 = vcmp.eq.s32.totalorder %v82, %v522
    %vm559 = vcmp.eq.s32.totalorder %v82, %v525
    %vm560 = vcmp.eq.s32.totalorder %v82, %v528
    %vm561 = vcmp.eq.s32.totalorder %v82, %v531
    %vm562 = vcmp.eq.s32.totalorder %v82, %v534
    %vm563 = vcmp.eq.s32.totalorder %v82, %v537
    %vm564 = vcmp.eq.s32.totalorder %v82, %v540
    %vm565 = vcmp.eq.s32.totalorder %v82, %v543
    %vm566 = vcmp.eq.s32.totalorder %v82, %v546
    %vm567 = vcmp.eq.s32.totalorder %v82, %v549
    %vm568 = vcmp.eq.s32.totalorder %v82, %v552
    %v569 = vsel %vm553, %v87, 0.0
    %v570 = vsel %vm554, %v88, 0.0
    %v571 = vsel %vm555, %v89, 0.0
    %v572 = vsel %vm556, %v90, 0.0
    %v573 = vsel %vm557, %v91, 0.0
    %v574 = vsel %vm558, %v92, 0.0
    %v575 = vsel %vm559, %v93, 0.0
    %v576 = vsel %vm560, %v94, 0.0
    %v577 = vsel %vm561, %v95, 0.0
    %v578 = vsel %vm562, %v96, 0.0
    %v579 = vsel %vm563, %v97, 0.0
    %v580 = vsel %vm564, %v98, 0.0
    %v581 = vsel %vm565, %v99, 0.0
    %v582 = vsel %vm566, %v100, 0.0
    %v583 = vsel %vm567, %v101, 0.0
    %v584 = vsel %vm568, %v102, 0.0
    %585 = vadd.xlane.f32.xlu0 %v569
    %v586 = vpop.xlane.xlu0 %585
    %587 = vadd.xlane.f32.xlu0 %v570
    %v588 = vpop.xlane.xlu0 %587
    %589 = vadd.xlane.f32.xlu0 %v571
    %v590 = vpop.xlane.xlu0 %589
    %591 = vadd.xlane.f32.xlu0 %v572
    %v592 = vpop.xlane.xlu0 %591
    %593 = vadd.xlane.f32.xlu0 %v573
    %v594 = vpop.xlane.xlu0 %593
    %595 = vadd.xlane.f32.xlu0 %v574
    %v596 = vpop.xlane.xlu0 %595
    %597 = vadd.xlane.f32.xlu0 %v575
    %v598 = vpop.xlane.xlu0 %597
    %599 = vadd.xlane.f32.xlu0 %v576
    %v600 = vpop.xlane.xlu0 %599
    %601 = vadd.xlane.f32.xlu0 %v577
    %v602 = vpop.xlane.xlu0 %601
    %603 = vadd.xlane.f32.xlu0 %v578
    %v604 = vpop.xlane.xlu0 %603
    %605 = vadd.xlane.f32.xlu0 %v579
    %v606 = vpop.xlane.xlu0 %605
    %607 = vadd.xlane.f32.xlu0 %v580
    %v608 = vpop.xlane.xlu0 %607
    %609 = vadd.xlane.f32.xlu0 %v581
    %v610 = vpop.xlane.xlu0 %609
    %611 = vadd.xlane.f32.xlu0 %v582
    %v612 = vpop.xlane.xlu0 %611
    %613 = vadd.xlane.f32.xlu0 %v583
    %v614 = vpop.xlane.xlu0 %613
    %615 = vadd.xlane.f32.xlu0 %v584
    %v616 = vpop.xlane.xlu0 %615
    %v617 = vadd.f32 %v489, %v586
    %v618 = vadd.f32 %v490, %v588
    %v619 = vadd.f32 %v491, %v590
    %v620 = vadd.f32 %v492, %v592
    %v621 = vadd.f32 %v493, %v594
    %v622 = vadd.f32 %v494, %v596
    %v623 = vadd.f32 %v495, %v598
    %v624 = vadd.f32 %v496, %v600
    %v625 = vadd.f32 %v497, %v602
    %v626 = vadd.f32 %v498, %v604
    %v627 = vadd.f32 %v499, %v606
    %v628 = vadd.f32 %v500, %v608
    %v629 = vadd.f32 %v501, %v610
    %v630 = vadd.f32 %v502, %v612
    %v631 = vadd.f32 %v503, %v614
    %v632 = vadd.f32 %v504, %v616
    %633 = vst.msk [vmem:[#allocation4] sm:$0xff] %vm423, %v617
    %634 = vst.msk [vmem:[#allocation4 + $0x8] sm:$0xff] %vm423, %v618
    %635 = vst.msk [vmem:[#allocation4 + $0x10] sm:$0xff] %vm423, %v619
    %636 = vst.msk [vmem:[#allocation4 + $0x18] sm:$0xff] %vm423, %v620
    %637 = vst.msk [vmem:[#allocation4 + $0x20] sm:$0xff] %vm423, %v621
    %638 = vst.msk [vmem:[#allocation4 + $0x28] sm:$0xff] %vm423, %v622
    %639 = vst.msk [vmem:[#allocation4 + $0x30] sm:$0xff] %vm423, %v623
    %640 = vst.msk [vmem:[#allocation4 + $0x38] sm:$0xff] %vm423, %v624
    %641 = vst.msk [vmem:[#allocation4 + $0x40] sm:$0xff] %vm423, %v625
    %642 = vst.msk [vmem:[#allocation4 + $0x48] sm:$0xff] %vm423, %v626
    %643 = vst.msk [vmem:[#allocation4 + $0x50] sm:$0xff] %vm423, %v627
    %644 = vst.msk [vmem:[#allocation4 + $0x58] sm:$0xff] %vm423, %v628
    %645 = vst.msk [vmem:[#allocation4 + $0x60] sm:$0xff] %vm423, %v629
    %646 = vst.msk [vmem:[#allocation4 + $0x68] sm:$0xff] %vm423, %v630
    %647 = vst.msk [vmem:[#allocation4 + $0x70] sm:$0xff] %vm423, %v631
    %648 = vst.msk [vmem:[#allocation4 + $0x78] sm:$0xff] %vm423, %v632
    // Predicated region
    $region14: #{tpu_custom_call.1} parent=1 // pred_check
      %p649 = pneg %p12
    $region15: #{tpu_custom_call.1} parent=1 // pred_check_branch
      %651 = sbr.rel (%p649) target = $region17
    $region16: #{tpu_custom_call.1} parent=1 // pred_region
      %v652 = vld [vmem:[#allocation2] sm:$0xff]
      %v653 = vld [vmem:[#allocation2 + $0x8] sm:$0xff]
      %v654 = vld [vmem:[#allocation2 + $0x10] sm:$0xff]
      %v655 = vld [vmem:[#allocation2 + $0x18] sm:$0xff]
      %v656 = vld [vmem:[#allocation2 + $0x20] sm:$0xff]
      %v657 = vld [vmem:[#allocation2 + $0x28] sm:$0xff]
      %v658 = vld [vmem:[#allocation2 + $0x30] sm:$0xff]
      %v659 = vld [vmem:[#allocation2 + $0x38] sm:$0xff]
      %v660 = vld [vmem:[#allocation2 + $0x40] sm:$0xff]
      %v661 = vld [vmem:[#allocation2 + $0x48] sm:$0xff]
      %v662 = vld [vmem:[#allocation2 + $0x50] sm:$0xff]
      %v663 = vld [vmem:[#allocation2 + $0x58] sm:$0xff]
      %v664 = vld [vmem:[#allocation2 + $0x60] sm:$0xff]
      %v665 = vld [vmem:[#allocation2 + $0x68] sm:$0xff]
      %v666 = vld [vmem:[#allocation2 + $0x70] sm:$0xff]
      %v667 = vld [vmem:[#allocation2 + $0x78] sm:$0xff]
      %v668 = vld [vmem:[#allocation3] sm:$0xff]
      %v669 = vld [vmem:[#allocation3 + $0x8] sm:$0xff]
      %v670 = vld [vmem:[#allocation3 + $0x10] sm:$0xff]
      %v671 = vld [vmem:[#allocation3 + $0x18] sm:$0xff]
      %v672 = vld [vmem:[#allocation3 + $0x20] sm:$0xff]
      %v673 = vld [vmem:[#allocation3 + $0x28] sm:$0xff]
      %v674 = vld [vmem:[#allocation3 + $0x30] sm:$0xff]
      %v675 = vld [vmem:[#allocation3 + $0x38] sm:$0xff]
      %v676 = vld [vmem:[#allocation3 + $0x40] sm:$0xff]
      %v677 = vld [vmem:[#allocation3 + $0x48] sm:$0xff]
      %v678 = vld [vmem:[#allocation3 + $0x50] sm:$0xff]
      %v679 = vld [vmem:[#allocation3 + $0x58] sm:$0xff]
      %v680 = vld [vmem:[#allocation3 + $0x60] sm:$0xff]
      %v681 = vld [vmem:[#allocation3 + $0x68] sm:$0xff]
      %v682 = vld [vmem:[#allocation3 + $0x70] sm:$0xff]
      %v683 = vld [vmem:[#allocation3 + $0x78] sm:$0xff]
      %v684 = vlog2.pop %v668
      %v685 = vmul.f32 %v684, 0.6931472
      %v686 = vlog2.pop %v669
      %v687 = vmul.f32 %v686, 0.6931472
      %v688 = vlog2.pop %v670
      %v689 = vmul.f32 %v688, 0.6931472
      %v690 = vlog2.pop %v671
      %v691 = vmul.f32 %v690, 0.6931472
      %v692 = vlog2.pop %v672
      %v693 = vmul.f32 %v692, 0.6931472
      %v694 = vlog2.pop %v673
      %v695 = vmul.f32 %v694, 0.6931472
      %v696 = vlog2.pop %v674
      %v697 = vmul.f32 %v696, 0.6931472
      %v698 = vlog2.pop %v675
      %v699 = vmul.f32 %v698, 0.6931472
      %v700 = vlog2.pop %v676
      %v701 = vmul.f32 %v700, 0.6931472
      %v702 = vlog2.pop %v677
      %v703 = vmul.f32 %v702, 0.6931472
      %v704 = vlog2.pop %v678
      %v705 = vmul.f32 %v704, 0.6931472
      %v706 = vlog2.pop %v679
      %v707 = vmul.f32 %v706, 0.6931472
      %v708 = vlog2.pop %v680
      %v709 = vmul.f32 %v708, 0.6931472
      %v710 = vlog2.pop %v681
      %v711 = vmul.f32 %v710, 0.6931472
      %v712 = vlog2.pop %v682
      %v713 = vmul.f32 %v712, 0.6931472
      %v714 = vlog2.pop %v683
      %v715 = vmul.f32 %v714, 0.6931472
      %v716 = vadd.f32 %v652, %v685
      %v717 = vadd.f32 %v653, %v687
      %v718 = vadd.f32 %v654, %v689
      %v719 = vadd.f32 %v655, %v691
      %v720 = vadd.f32 %v656, %v693
      %v721 = vadd.f32 %v657, %v695
      %v722 = vadd.f32 %v658, %v697
      %v723 = vadd.f32 %v659, %v699
      %v724 = vadd.f32 %v660, %v701
      %v725 = vadd.f32 %v661, %v703
      %v726 = vadd.f32 %v662, %v705
      %v727 = vadd.f32 %v663, %v707
      %v728 = vadd.f32 %v664, %v709
      %v729 = vadd.f32 %v665, %v711
      %v730 = vadd.f32 %v666, %v713
      %v731 = vadd.f32 %v667, %v715
      %s732 = smul.u32 0, 128
      %v733 = vlaneseq
      %v734 = vshrl.u32 %v733, 7
      %v735 = vadd.s32 %v734, 8
      %v736 = vadd.s32 %v734, 16
      %v737 = vadd.s32 %v734, 24
      %v738 = vadd.s32 %v734, 32
      %v739 = vadd.s32 %v734, 40
      %v740 = vadd.s32 %v734, 48
      %v741 = vadd.s32 %v734, 56
      %v742 = vadd.s32 %v734, 64
      %v743 = vadd.s32 %v734, 72
      %v744 = vadd.s32 %v734, 80
      %v745 = vadd.s32 %v734, 88
      %v746 = vadd.s32 %v734, 96
      %v747 = vadd.s32 %v734, 104
      %v748 = vadd.s32 %v734, 112
      %v749 = vadd.s32 %v734, 120
      %v750 = vstv %s732
      %v751 = vadd.s32 %v750, %v734
      %v752 = vadd.s32 %v750, %v735
      %v753 = vadd.s32 %v750, %v736
      %v754 = vadd.s32 %v750, %v737
      %v755 = vadd.s32 %v750, %v738
      %v756 = vadd.s32 %v750, %v739
      %v757 = vadd.s32 %v750, %v740
      %v758 = vadd.s32 %v750, %v741
      %v759 = vadd.s32 %v750, %v742
      %v760 = vadd.s32 %v750, %v743
      %v761 = vadd.s32 %v750, %v744
      %v762 = vadd.s32 %v750, %v745
      %v763 = vadd.s32 %v750, %v746
      %v764 = vadd.s32 %v750, %v747
      %v765 = vadd.s32 %v750, %v748
      %v766 = vadd.s32 %v750, %v749
      %vm767 = vcmp.lt.s32.totalorder %v751, 16
      %vm768 = vcmp.lt.s32.totalorder %v752, 16
      %vm769 = vcmp.lt.s32.totalorder %v753, 16
      %vm770 = vcmp.lt.s32.totalorder %v754, 16
      %vm771 = vcmp.lt.s32.totalorder %v755, 16
      %vm772 = vcmp.lt.s32.totalorder %v756, 16
      %vm773 = vcmp.lt.s32.totalorder %v757, 16
      %vm774 = vcmp.lt.s32.totalorder %v758, 16
      %vm775 = vcmp.lt.s32.totalorder %v759, 16
      %vm776 = vcmp.lt.s32.totalorder %v760, 16
      %vm777 = vcmp.lt.s32.totalorder %v761, 16
      %vm778 = vcmp.lt.s32.totalorder %v762, 16
      %vm779 = vcmp.lt.s32.totalorder %v763, 16
      %vm780 = vcmp.lt.s32.totalorder %v764, 16
      %vm781 = vcmp.lt.s32.totalorder %v765, 16
      %vm782 = vcmp.lt.s32.totalorder %v766, 16
      %v783 = vld [vmem:[#allocation4] sm:$0xff]
      %v784 = vld [vmem:[#allocation4 + $0x8] sm:$0xff]
      %v785 = vld [vmem:[#allocation4 + $0x10] sm:$0xff]
      %v786 = vld [vmem:[#allocation4 + $0x18] sm:$0xff]
      %v787 = vld [vmem:[#allocation4 + $0x20] sm:$0xff]
      %v788 = vld [vmem:[#allocation4 + $0x28] sm:$0xff]
      %v789 = vld [vmem:[#allocation4 + $0x30] sm:$0xff]
      %v790 = vld [vmem:[#allocation4 + $0x38] sm:$0xff]
      %v791 = vld [vmem:[#allocation4 + $0x40] sm:$0xff]
      %v792 = vld [vmem:[#allocation4 + $0x48] sm:$0xff]
      %v793 = vld [vmem:[#allocation4 + $0x50] sm:$0xff]
      %v794 = vld [vmem:[#allocation4 + $0x58] sm:$0xff]
      %v795 = vld [vmem:[#allocation4 + $0x60] sm:$0xff]
      %v796 = vld [vmem:[#allocation4 + $0x68] sm:$0xff]
      %v797 = vld [vmem:[#allocation4 + $0x70] sm:$0xff]
      %v798 = vld [vmem:[#allocation4 + $0x78] sm:$0xff]
      %v799 = vsub.f32 %v716, %v783
      %v800 = vsub.f32 %v717, %v784
      %v801 = vsub.f32 %v718, %v785
      %v802 = vsub.f32 %v719, %v786
      %v803 = vsub.f32 %v720, %v787
      %v804 = vsub.f32 %v721, %v788
      %v805 = vsub.f32 %v722, %v789
      %v806 = vsub.f32 %v723, %v790
      %v807 = vsub.f32 %v724, %v791
      %v808 = vsub.f32 %v725, %v792
      %v809 = vsub.f32 %v726, %v793
      %v810 = vsub.f32 %v727, %v794
      %v811 = vsub.f32 %v728, %v795
      %v812 = vsub.f32 %v729, %v796
      %v813 = vsub.f32 %v730, %v797
      %v814 = vsub.f32 %v731, %v798
      %v815 = vsel %vm767, %v799, 0.0
      %v816 = vsel %vm768, %v800, 0.0
      %v817 = vsel %vm769, %v801, 0.0
      %v818 = vsel %vm770, %v802, 0.0
      %v819 = vsel %vm771, %v803, 0.0
      %v820 = vsel %vm772, %v804, 0.0
      %v821 = vsel %vm773, %v805, 0.0
      %v822 = vsel %vm774, %v806, 0.0
      %v823 = vsel %vm775, %v807, 0.0
      %v824 = vsel %vm776, %v808, 0.0
      %v825 = vsel %vm777, %v809, 0.0
      %v826 = vsel %vm778, %v810, 0.0
      %v827 = vsel %vm779, %v811, 0.0
      %v828 = vsel %vm780, %v812, 0.0
      %v829 = vsel %vm781, %v813, 0.0
      %v830 = vsel %vm782, %v814, 0.0
      %v831 = vsel %vm423, %v815, 0.0
      %v832 = vsel %vm423, %v816, 0.0
      %v833 = vadd.f32 %v831, %v832
      %v834 = vsel %vm423, %v817, 0.0
      %v835 = vadd.f32 %v833, %v834
      %v836 = vsel %vm423, %v818, 0.0
      %v837 = vadd.f32 %v835, %v836
      %v838 = vsel %vm423, %v819, 0.0
      %v839 = vadd.f32 %v837, %v838
      %v840 = vsel %vm423, %v820, 0.0
      %v841 = vadd.f32 %v839, %v840
      %v842 = vsel %vm423, %v821, 0.0
      %v843 = vadd.f32 %v841, %v842
      %v844 = vsel %vm423, %v822, 0.0
      %v845 = vadd.f32 %v843, %v844
      %v846 = vsel %vm423, %v823, 0.0
      %v847 = vadd.f32 %v845, %v846
      %v848 = vsel %vm423, %v824, 0.0
      %v849 = vadd.f32 %v847, %v848
      %v850 = vsel %vm423, %v825, 0.0
      %v851 = vadd.f32 %v849, %v850
      %v852 = vsel %vm423, %v826, 0.0
      %v853 = vadd.f32 %v851, %v852
      %v854 = vsel %vm423, %v827, 0.0
      %v855 = vadd.f32 %v853, %v854
      %v856 = vsel %vm423, %v828, 0.0
      %v857 = vadd.f32 %v855, %v856
      %v858 = vsel %vm423, %v829, 0.0
      %v859 = vadd.f32 %v857, %v858
      %v860 = vsel %vm423, %v830, 0.0
      %v861 = vadd.f32 %v859, %v860
      %v862 = vrot.slane %v861, 4
      %v863 = vadd.f32 %v861, %v862
      %v864 = vrot.slane %v863, 2
      %v865 = vadd.f32 %v863, %v864
      %v866 = vrot.slane %v865, 1
      %v867 = vadd.f32 %v865, %v866
      %869 = vset.pattern.permute.xlu0 0
      %870 = vperm.xlu0 %869, %v867
      %v871 = vpop.permute.xlu0 %870
      %873 = vst [vmem:[#allocation5] sm:$0xff] %v871
    $region17: #{tpu_custom_call.1} parent=1 // pred_fallthru
      _
    // Predicated region
    $region18: #{tpu_custom_call.1} parent=1 // pred_check
      _
    $region19: #{tpu_custom_call.1} parent=1 // pred_check_branch
      %875 = sbr.rel (0) target = $region21
    $region20: #{tpu_custom_call.1} parent=1 // pred_region
      %s877 = ssub.s32 128, 128
      %878 = vsyncadd [#allocation6], %s877
      %s880 = sshll.u32 [#allocation5], 4
      %s881 = int_to_ptr.vmem [resolvable:$true] %s880
      %883 = dma.vmem_to_hbm [thread:$0]  %s881, 128, %s2, [#allocation6]
    $region21: #{tpu_custom_call.1} parent=1 // pred_fallthru
      _
    // Predicated region
    $region22: #{tpu_custom_call.1} parent=1 // pred_check
      _
    $region23: #{tpu_custom_call.1} parent=1 // pred_check_branch
      %885 = sbr.rel (0) target = $region25
    $region24: #{tpu_custom_call.1} parent=1 // pred_region
      %886 = dma.done [#allocation6], 128
    $region25: #{tpu_custom_call.1} parent=1 // pred_fallthru
      _
    %887 = vsyncpa [#allocation6], 1

</llo_original>
